<compile_context>
chip_gen: v7x
topology: tpu7x:2x2x1
jax: 0.10.0
libtpu: 0.0.40
codegen_flags: <defaults>
</compile_context>

<pallas_src>
import functools

import jax
import jax.numpy as jnp
from jax.experimental import pallas as pl
from jax.experimental.pallas import tpu as pltpu


def _uaa_kernel(x_ref, w3_ref, bmp_ref, mask_ref, o_ref, *, W, BHW):
    xt = x_ref[...]                                        # (C, BHW), lane-dense f32

    # ---- im2col for the 3x3 conv (padding=1): 9 static XLU rolls + masks ----
    taps = []
    for ky in range(3):
        for kx in range(3):
            off = (ky - 1) * W + (kx - 1)                  # flat-pixel offset of tap
            if off == 0:
                taps.append(xt)
            else:
                taps.append(pltpu.roll(xt, shift=(-off) % BHW, axis=1))
    # mask_ref is pre-expanded to (9C, BHW); it zeros out-of-image taps, which also
    # covers every lane the circular roll wrapped (image edges / batch boundaries).
    patches = jnp.concatenate(taps, axis=0) * mask_ref[...]          # (9C, BHW)

    # ---- 3x3 conv with folded branch-1x1 convs + folded BatchNorm, then ReLU ----
    w3 = w3_ref[...]                                       # (32, 9C)  Wab+BN folded
    bias_map = bmp_ref[0:32, :]                            # (32, BHW) BN-folded bias map
    wout_b = bmp_ref[32:64, :]                             # (32, BHW) final 1x1 weight
    bout_b = bmp_ref[64:65, :]                             # (1, BHW)  final 1x1 bias

    y = jnp.maximum(
        jnp.dot(w3, patches, preferred_element_type=jnp.float32) + bias_map, 0.0)

    # ---- final 1x1 -> 1 channel: VPU multiply + sublane reduction (lane-dense) ----
    att = jax.nn.sigmoid(jnp.sum(y * wout_b, axis=0, keepdims=True) + bout_b)  # (1, BHW)

    # ---- gate the input ----
    o_ref[...] = (att * xt).astype(o_ref.dtype)


def uaa_forward(x_nchw, packed_params, b_tile=None):
    w3_pack, bmap_pack, mask_pack = packed_params
    N, C, H, W = x_nchw.shape
    HW = H * W

    # Largest batch tile that keeps >= 2 grid steps (so v7x's 2 TCs both get work).
    if b_tile is None:
        b_tile = N // 2 if (N >= 2 and N % 2 == 0) else 1
    assert N % b_tile == 0
    steps = N // b_tile
    BHW = b_tile * HW

    # Channels-leading, lane-dense slab: (C, N*HW); columns are image-major.
    x2d = x_nchw.reshape(N, C, HW).transpose(1, 0, 2).reshape(C, N * HW)

    # Tile the per-image bias map / masks across the batch tile (host-side, tiny).
    bmap_t = jnp.tile(bmap_pack, (1, b_tile))              # (65, BHW)
    mask_t = jnp.tile(mask_pack, (1, b_tile))              # (9C, BHW)

    kernel = functools.partial(_uaa_kernel, W=W, BHW=BHW)

    out2d = pl.pallas_call(
        kernel,
        out_shape=jax.ShapeDtypeStruct((C, N * HW), x_nchw.dtype),
        grid_spec=pltpu.PrefetchScalarGridSpec(
            num_scalar_prefetch=0,
            grid=(steps,),
            in_specs=[
                pl.BlockSpec((C, BHW), lambda i: (0, i)),
                pl.BlockSpec(w3_pack.shape, lambda i: (0, 0)),
                pl.BlockSpec(bmap_t.shape, lambda i: (0, 0)),
                pl.BlockSpec(mask_t.shape, lambda i: (0, 0)),
            ],
            out_specs=pl.BlockSpec((C, BHW), lambda i: (0, i)),
        ),
        # Batch-tile axis is independent -> "parallel"; VMEM per step is a few
        # hundred KB, far below the default scoped limit on v5e/v6e/v7x.
        compiler_params=pltpu.CompilerParams(
            dimension_semantics=("parallel",)),
    )(x2d, w3_pack, bmap_t, mask_t)

    return out2d.reshape(C, N, H, W).transpose(1, 0, 2, 3)


# ----------------------------- host-side param prep -----------------------------

def init_raw_params(key, C):
    """Parameters in PyTorch layouts (Conv2d weight = (out, in[, kh, kw]))."""
    ks = jax.random.split(key, 11)
    return dict(
        wa=0.2 * jax.random.normal(ks[0], (C, C), jnp.float32),
        ba=0.1 * jax.random.normal(ks[1], (C,), jnp.float32),
        wb=0.2 * jax.random.normal(ks[2], (C, C), jnp.float32),
        bb=0.1 * jax.random.normal(ks[3], (C,), jnp.float32),
        w3=0.1 * jax.random.normal(ks[4], (32, 2 * C, 3, 3), jnp.float32),   # OIHW
        b3=0.1 * jax.random.normal(ks[5], (32,), jnp.float32),
        gamma=1.0 + 0.1 * jax.random.normal(ks[6], (32,), jnp.float32),
        beta=0.1 * jax.random.normal(ks[7], (32,), jnp.float32),
        mean=0.1 * jax.random.normal(ks[8], (32,), jnp.float32),
        var=1.0 + 0.1 * jnp.abs(jax.random.normal(ks[9], (32,), jnp.float32)),
        wout=0.2 * jax.random.normal(ks[10], (1, 32), jnp.float32),
        bout=jnp.full((1,), 0.05, jnp.float32),
        eps=1e-5,
    )


def pack_params(p, H, W):
    """Fold 1x1 branches + BatchNorm into the 3x3 conv, pre-broadcast small params."""
    C = p["wa"].shape[0]
    HW = H * W

    wab = jnp.concatenate([p["wa"], p["wb"]], axis=0)             # (2C, C)
    bab = jnp.concatenate([p["ba"], p["bb"]], axis=0)             # (2C,)

    scale = p["gamma"] / jnp.sqrt(p["var"] + p["eps"])            # (32,)
    shift = p["beta"] - p["mean"] * scale                         # (32,)

    hh = jnp.repeat(jnp.arange(H), W)                             # h index per flat pixel
    ww = jnp.tile(jnp.arange(W), H)                               # w index per flat pixel

    w3f_taps, tap_masks = [], []
    bmap = jnp.broadcast_to(p["b3"][:, None], (32, HW)).astype(jnp.float32)
    for ky in range(3):
        for kx in range(3):
            dy, dx = ky - 1, kx - 1
            valid = ((hh + dy >= 0) & (hh + dy < H) &
                     (ww + dx >= 0) & (ww + dx < W)).astype(jnp.float32)   # (HW,)
            tap_masks.append(valid)
            w3_t = p["w3"][:, :, ky, kx]                          # (32, 2C)
            w3f_taps.append(w3_t @ wab)                           # fold branch convs
            bmap = bmap + (w3_t @ bab)[:, None] * valid[None, :]  # branch biases -> map

    # tap-major (ky,kx), channel-minor ordering — matches the in-kernel concat order
    w3f = jnp.concatenate(w3f_taps, axis=1)                       # (32, 9C)
    w3_pack = scale[:, None] * w3f                                # BN folded into weights
    bmap_bn = scale[:, None] * bmap + shift[:, None]              # (32, HW) BN-folded bias

    wout_b = jnp.broadcast_to(p["wout"].reshape(32)[:, None], (32, HW))
    bout_b = jnp.full((1, HW), p["bout"][0], jnp.float32)
    bmap_pack = jnp.concatenate([bmap_bn, wout_b, bout_b], axis=0)  # (65, HW)

    # per-tap validity masks expanded to one row per im2col row: (9C, HW)
    mask_pack = jnp.repeat(jnp.stack(tap_masks, axis=0), C, axis=0)

    return w3_pack, bmap_pack, mask_pack


# --------------------------------- pure-JAX reference ---------------------------------

def ref_forward(x, p):
    """Un-fused reference in NCHW, mirroring the PyTorch module (inference BN)."""
    b1 = jnp.einsum('nchw,oc->nohw', x, p["wa"]) + p["ba"][None, :, None, None]
    b2 = jnp.einsum('nchw,oc->nohw', x, p["wb"]) + p["bb"][None, :, None, None]
    concat = jnp.concatenate([b1, b2], axis=1)
    c3 = jax.lax.conv_general_dilated(
        concat, p["w3"], window_strides=(1, 1), padding="SAME",
        dimension_numbers=("NCHW", "OIHW", "NCHW")) + p["b3"][None, :, None, None]
    y = (c3 - p["mean"][None, :, None, None]) * (
        p["gamma"][None, :, None, None] /
        jnp.sqrt(p["var"][None, :, None, None] + p["eps"])) + p["beta"][None, :, None, None]
    y = jnp.maximum(y, 0.0)
    att = jax.nn.sigmoid(jnp.einsum('nchw,oc->nohw', y, p["wout"]) + p["bout"][0])
    return att * x


if __name__ == "__main__":
    N, C, H, W = 2, 4, 16, 16
    key = jax.random.PRNGKey(0)
    k_x, k_p = jax.random.split(key)
    x = jax.random.normal(k_x, (N, C, H, W), jnp.float32)     # NCHW, same as PyTorch
    raw = init_raw_params(k_p, C)
    packed = pack_params(raw, H, W)

    out = uaa_forward(x, packed)
    out = jax.block_until_ready(out)

    ref = ref_forward(x, raw)
    max_err = float(jnp.max(jnp.abs(out - ref)))
    assert max_err < 1e-4, f"mismatch vs reference: {max_err}"
    print("KERNEL_OK")
</pallas_src>

<mosaic_0001>
module attributes {stable_mosaic.version = 11 : i64} {
  func.func @_uaa_kernel(%arg0: i32, %arg1: memref<4x256xf32, #tpu.memory_space<vmem>>, %arg2: memref<32x36xf32, #tpu.memory_space<vmem>>, %arg3: memref<65x256xf32, #tpu.memory_space<vmem>>, %arg4: memref<36x256xf32, #tpu.memory_space<vmem>>, %arg5: memref<4x256xf32, #tpu.memory_space<vmem>>) attributes {dimension_semantics = [#tpu.dimension_semantics<parallel>], iteration_bounds = array<i64: 2>, scalar_prefetch = 0 : i64, scratch_operands = 0 : i64, tpu.core_type = #tpu.core_type<tc>, window_params = [{transform_indices = @transform_0, window_bounds = array<i64: 4, 256>}, {pipeline_mode = #tpu.pipeline_mode<synchronous>, transform_indices = @transform_1, window_bounds = array<i64: 32, 36>}, {pipeline_mode = #tpu.pipeline_mode<synchronous>, transform_indices = @transform_2, window_bounds = array<i64: 65, 256>}, {pipeline_mode = #tpu.pipeline_mode<synchronous>, transform_indices = @transform_3, window_bounds = array<i64: 36, 256>}, {transform_indices = @transform_4, window_bounds = array<i64: 4, 256>}]} {
    %c0 = arith.constant 0 : index
    %c0_0 = arith.constant 0 : index
    %0 = vector.load %arg1[%c0, %c0_0] : memref<4x256xf32, #tpu.memory_space<vmem>>, vector<4x256xf32>
    %c17_i32 = arith.constant 17 : i32
    %1 = tpu.dynamic_rotate %0 by %c17_i32 dim 1 : vector<4x256xf32>, i32 -> vector<4x256xf32>
    %c16_i32 = arith.constant 16 : i32
    %2 = tpu.dynamic_rotate %0 by %c16_i32 dim 1 : vector<4x256xf32>, i32 -> vector<4x256xf32>
    %c15_i32 = arith.constant 15 : i32
    %3 = tpu.dynamic_rotate %0 by %c15_i32 dim 1 : vector<4x256xf32>, i32 -> vector<4x256xf32>
    %c1_i32 = arith.constant 1 : i32
    %4 = tpu.dynamic_rotate %0 by %c1_i32 dim 1 : vector<4x256xf32>, i32 -> vector<4x256xf32>
    %c255_i32 = arith.constant 255 : i32
    %5 = tpu.dynamic_rotate %0 by %c255_i32 dim 1 : vector<4x256xf32>, i32 -> vector<4x256xf32>
    %c241_i32 = arith.constant 241 : i32
    %6 = tpu.dynamic_rotate %0 by %c241_i32 dim 1 : vector<4x256xf32>, i32 -> vector<4x256xf32>
    %c240_i32 = arith.constant 240 : i32
    %7 = tpu.dynamic_rotate %0 by %c240_i32 dim 1 : vector<4x256xf32>, i32 -> vector<4x256xf32>
    %c239_i32 = arith.constant 239 : i32
    %8 = tpu.dynamic_rotate %0 by %c239_i32 dim 1 : vector<4x256xf32>, i32 -> vector<4x256xf32>
    %9 = tpu.concatenate %1, %2, %3, %4, %0, %5, %6, %7, %8 in 0 : vector<4x256xf32>, vector<4x256xf32>, vector<4x256xf32>, vector<4x256xf32>, vector<4x256xf32>, vector<4x256xf32>, vector<4x256xf32>, vector<4x256xf32>, vector<4x256xf32> -> vector<36x256xf32>
    %c0_1 = arith.constant 0 : index
    %c0_2 = arith.constant 0 : index
    %10 = vector.load %arg4[%c0_1, %c0_2] : memref<36x256xf32, #tpu.memory_space<vmem>>, vector<36x256xf32>
    %11 = arith.mulf %9, %10 : vector<36x256xf32>
    %c0_3 = arith.constant 0 : index
    %c0_4 = arith.constant 0 : index
    %12 = vector.load %arg2[%c0_3, %c0_4] : memref<32x36xf32, #tpu.memory_space<vmem>>, vector<32x36xf32>
    %c0_5 = arith.constant 0 : index
    %c0_6 = arith.constant 0 : index
    %13 = vector.load %arg3[%c0_5, %c0_6] : memref<65x256xf32, #tpu.memory_space<vmem>>, vector<32x256xf32>
    %c32 = arith.constant 32 : index
    %c0_7 = arith.constant 0 : index
    %14 = vector.load %arg3[%c32, %c0_7] : memref<65x256xf32, #tpu.memory_space<vmem>>, vector<32x256xf32>
    %c64 = arith.constant 64 : index
    %c0_8 = arith.constant 0 : index
    %15 = vector.load %arg3[%c64, %c0_8] : memref<65x256xf32, #tpu.memory_space<vmem>>, vector<1x256xf32>
    %cst = arith.constant dense<0.000000e+00> : vector<32x256xf32>
    %16 = tpu.matmul %12, %11, %cst {dimension_numbers = #tpu.dot_dimension_numbers<[1], [0], [0], [1], [0, 0, 1, 1], [], []>} : vector<32x36xf32>, vector<36x256xf32>, vector<32x256xf32> -> vector<32x256xf32>
    %17 = arith.addf %16, %13 : vector<32x256xf32>
    %cst_9 = arith.constant 0.000000e+00 : f32
    %18 = vector.broadcast %cst_9 : f32 to vector<32x256xf32>
    %19 = arith.maximumf %17, %18 : vector<32x256xf32>
    %20 = arith.mulf %19, %14 : vector<32x256xf32>
    %cst_10 = arith.constant dense<0.000000e+00> : vector<256xf32>
    %21 = vector.multi_reduction <add>, %20, %cst_10 [0] : vector<32x256xf32> to vector<256xf32>
    %22 = vector.shape_cast %21 : vector<256xf32> to vector<1x256xf32>
    %23 = arith.addf %22, %15 : vector<1x256xf32>
    %24 = arith.negf %23 : vector<1x256xf32>
    %25 = math.exp %24 : vector<1x256xf32>
    %cst_11 = arith.constant 1.000000e+00 : f32
    %26 = vector.broadcast %cst_11 : f32 to vector<1x256xf32>
    %27 = arith.addf %26, %25 : vector<1x256xf32>
    %28 = arith.divf %26, %27 : vector<1x256xf32>
    %29 = vector.broadcast %28 : vector<1x256xf32> to vector<4x256xf32>
    %30 = arith.mulf %29, %0 : vector<4x256xf32>
    %c0_12 = arith.constant 0 : index
    %c0_13 = arith.constant 0 : index
    %31 = vector.load %arg5[%c0_12, %c0_13] : memref<4x256xf32, #tpu.memory_space<vmem>>, vector<4x256xf32>
    tpu.vector_store %arg5[%c0_12, %c0_13], %30 {strides = array<i32>} : memref<4x256xf32, #tpu.memory_space<vmem>>, vector<4x256xf32>,
    return
  }
  func.func @transform_0(%arg0: i32) -> (i32, i32) {
    %c0_i32 = arith.constant 0 : i32
    %c0_i32_0 = arith.constant 0 : i32
    return %c0_i32, %arg0 : i32, i32
  }
  func.func @transform_1(%arg0: i32) -> (i32, i32) {
    %c0_i32 = arith.constant 0 : i32
    %c0_i32_0 = arith.constant 0 : i32
    %c0_i32_1 = arith.constant 0 : i32
    return %c0_i32, %c0_i32_0 : i32, i32
  }
  func.func @transform_2(%arg0: i32) -> (i32, i32) {
    %c0_i32 = arith.constant 0 : i32
    %c0_i32_0 = arith.constant 0 : i32
    %c0_i32_1 = arith.constant 0 : i32
    return %c0_i32, %c0_i32_0 : i32, i32
  }
  func.func @transform_3(%arg0: i32) -> (i32, i32) {
    %c0_i32 = arith.constant 0 : i32
    %c0_i32_0 = arith.constant 0 : i32
    %c0_i32_1 = arith.constant 0 : i32
    return %c0_i32, %c0_i32_0 : i32, i32
  }
  func.func @transform_4(%arg0: i32) -> (i32, i32) {
    %c0_i32 = arith.constant 0 : i32
    %c0_i32_0 = arith.constant 0 : i32
    return %c0_i32, %arg0 : i32, i32
  }
}

</mosaic_0001>

<llo_original>
// kernel: tpu_custom_call.1
$region0: #{tpu_custom_call.1}
  #allocation0 [shape = 'u32[]', space=smem, size = 0x4, offset = 0x4, fixed_abs, tag = 'smem constant byte address 0x4 - core index']
  #allocation1 [shape = 'u32[144,128]{1,0:T(1,128)}', space=vmem, size = 0x12000, scoped, tag = 'internal scratch']
  %s0 = inlined_call_operand.hbm [shape: f32[4,512], index: 0, kind: input, shape index: {}]
  %s1 = inlined_call_operand.hbm [shape: f32[32,36], index: 1, kind: input, shape index: {}]
  %s2 = inlined_call_operand.hbm [shape: f32[65,256], index: 2, kind: input, shape index: {}]
  %s3 = inlined_call_operand.hbm [shape: f32[36,256], index: 3, kind: input, shape index: {}]
  %s4 = inlined_call_operand.hbm [shape: f32[4,512], index: 4, kind: output, shape index: {}]
  %s5 = sld [smem:[#allocation0]]
  $region65: #{tpu_custom_call.1} parent=0
    _
  %s7 = ssub.s32 1, %s5
  %s8 = scalar_select 0, %s7, %s5
  $region1: #{tpu_custom_call.1} parent=0
    #allocation2 [shape = 'u8[8192]{0}', space=vmem, size = 0x2000, scoped, tag = 'input window, operand 0']
    #allocation3 [shape = 's32[2]{0}', space=sflag, size = 0x8, scoped, tag = 'scoped memory for tpu_custom_call.1']
    #allocation4 [shape = 's32[2]{0}', space=sflag, size = 0x8, scoped, tag = 'scoped memory for tpu_custom_call.1']
    #allocation5 [shape = 'u8[16384]{0}', space=vmem, size = 0x4000, scoped, tag = 'input window, operand 1, single buffered']
    #allocation6 [shape = 's32[1]{0}', space=sflag, size = 0x4, scoped, tag = 'scoped memory for tpu_custom_call.1']
    #allocation7 [shape = 'u8[73728]{0}', space=vmem, size = 0x12000, scoped, tag = 'input window, operand 2, single buffered']
    #allocation8 [shape = 'u8[40960]{0}', space=vmem, size = 0xa000, scoped, tag = 'input window, operand 3, single buffered']
    #allocation9 [shape = 's32[1]{0}', space=sflag, size = 0x4, scoped, tag = 'scoped memory for tpu_custom_call.1']
    #allocation10 [shape = 'u8[8192]{0}', space=vmem, size = 0x2000, scoped, tag = 'output window, operand 0']
    %9 = vsyncpa [#allocation3], 0
    %s10 = scalar_lea.sflag [#allocation3], 1
    %11 = vsyncpa %s10, 0
    %12 = vsyncpa [#allocation6], 0
    %13 = vsyncpa [#allocation9], 0
    %14 = vsyncpa [#allocation4], 0
    %s15 = scalar_lea.sflag [#allocation4], 1
    %16 = vsyncpa %s15, 0
    loop: start=0, step=1, limit=4
    $region2: #{tpu_custom_call.1} parent=1 // loop_pre_header
      _
    $region3: #{tpu_custom_call.1} parent=1 // loop_header
      %s18 = sphi 0, %s22
      %p19 = scmp.ge.s32.totalorder %s18, 4
      %s28 = sphi 0, %s30
      %s31 = sphi 0, %s28
      %s32 = sphi 0, %s31
      %s48 = sphi 0, %s32
      %s52 = sphi 0, %s52
      %s54 = sphi 0, %s52
      %s55 = sphi 0, %s54
      %s69 = sphi 0, %s55
      %s73 = sphi 0, %s73
      %s75 = sphi 0, %s73
      %s76 = sphi 0, %s75
      %s90 = sphi 0, %s76
      %s94 = sphi 0, %s94
      %s96 = sphi 0, %s94
      %s97 = sphi 0, %s96
      %s111 = sphi 0, %s97
      %s117 = sphi 0, %s119
      %s120 = sphi 0, %s117
      %s121 = sphi 0, %s120
      %s137 = sphi 0, %s121
    $region4: #{tpu_custom_call.1} parent=1 // loop_header_branch
      %21 = sbr.rel (%p19) target = $region8
    $region5: #{tpu_custom_call.1} parent=1 // loop_body
      %s23 = ssub.s32 %s18, 1
      %s24 = ssub.s32 %s18, 2
      %s25 = sadd.s32 %s18, 1
      %s26 = ssub.s32 %s18, %s25
      %p27 = scmp.eq.s32.totalorder %s26, 0
      %s29 = sadd.s32 %s28, 1
      %s30 = scalar_select %p27, %s28, %s29
      %p33 = pneg %p27
      %p34 = scmp.eq.s32.totalorder %s18, 1
      %p35 = por %p33, %p34
      %p36 = scmp.ne.s32.totalorder %s28, %s31
      %p37 = scmp.eq.s32.totalorder %s18, 0
      %p38 = por %p36, %p37
      %p39 = scmp.ne.s32.totalorder %s28, %s31
      %p40 = scmp.eq.s32.totalorder %s23, 1
      %p41 = por %p39, %p40
      %p42 = scmp.ne.s32.totalorder %s31, %s32
      %p43 = scmp.eq.s32.totalorder %s23, 0
      %p44 = por %p42, %p43
      %p45 = scmp.ne.s32.totalorder %s31, %s32
      %p46 = scmp.eq.s32.totalorder %s24, 1
      %p47 = por %p45, %p46
      %p49 = scmp.ne.s32.totalorder %s32, %s48
      %p50 = scmp.eq.s32.totalorder %s24, 0
      %p51 = por %p49, %p50
      %s53 = sadd.s32 %s52, 1
      %p56 = scmp.eq.s32.totalorder %s18, 1
      %p57 = scmp.ne.s32.totalorder %s52, %s54
      %p58 = scmp.eq.s32.totalorder %s18, 0
      %p59 = por %p57, %p58
      %p60 = scmp.ne.s32.totalorder %s52, %s54
      %p61 = scmp.eq.s32.totalorder %s23, 1
      %p62 = por %p60, %p61
      %p63 = scmp.ne.s32.totalorder %s54, %s55
      %p64 = scmp.eq.s32.totalorder %s23, 0
      %p65 = por %p63, %p64
      %p66 = scmp.ne.s32.totalorder %s54, %s55
      %p67 = scmp.eq.s32.totalorder %s24, 1
      %p68 = por %p66, %p67
      %p70 = scmp.ne.s32.totalorder %s55, %s69
      %p71 = scmp.eq.s32.totalorder %s24, 0
      %p72 = por %p70, %p71
      %s74 = sadd.s32 %s73, 1
      %p77 = scmp.eq.s32.totalorder %s18, 1
      %p78 = scmp.ne.s32.totalorder %s73, %s75
      %p79 = scmp.eq.s32.totalorder %s18, 0
      %p80 = por %p78, %p79
      %p81 = scmp.ne.s32.totalorder %s73, %s75
      %p82 = scmp.eq.s32.totalorder %s23, 1
      %p83 = por %p81, %p82
      %p84 = scmp.ne.s32.totalorder %s75, %s76
      %p85 = scmp.eq.s32.totalorder %s23, 0
      %p86 = por %p84, %p85
      %p87 = scmp.ne.s32.totalorder %s75, %s76
      %p88 = scmp.eq.s32.totalorder %s24, 1
      %p89 = por %p87, %p88
      %p91 = scmp.ne.s32.totalorder %s76, %s90
      %p92 = scmp.eq.s32.totalorder %s24, 0
      %p93 = por %p91, %p92
      %s95 = sadd.s32 %s94, 1
      %p98 = scmp.eq.s32.totalorder %s18, 1
      %p99 = scmp.ne.s32.totalorder %s94, %s96
      %p100 = scmp.eq.s32.totalorder %s18, 0
      %p101 = por %p99, %p100
      %p102 = scmp.ne.s32.totalorder %s94, %s96
      %p103 = scmp.eq.s32.totalorder %s23, 1
      %p104 = por %p102, %p103
      %p105 = scmp.ne.s32.totalorder %s96, %s97
      %p106 = scmp.eq.s32.totalorder %s23, 0
      %p107 = por %p105, %p106
      %p108 = scmp.ne.s32.totalorder %s96, %s97
      %p109 = scmp.eq.s32.totalorder %s24, 1
      %p110 = por %p108, %p109
      %p112 = scmp.ne.s32.totalorder %s97, %s111
      %p113 = scmp.eq.s32.totalorder %s24, 0
      %p114 = por %p112, %p113
      %s115 = ssub.s32 %s18, %s25
      %p116 = scmp.eq.s32.totalorder %s115, 0
      %s118 = sadd.s32 %s117, 1
      %s119 = scalar_select %p116, %s117, %s118
      %p122 = pneg %p116
      %p123 = scmp.eq.s32.totalorder %s18, 1
      %p124 = por %p122, %p123
      %p125 = scmp.ne.s32.totalorder %s117, %s120
      %p126 = scmp.eq.s32.totalorder %s18, 0
      %p127 = por %p125, %p126
      %p128 = scmp.ne.s32.totalorder %s117, %s120
      %p129 = scmp.eq.s32.totalorder %s23, 1
      %p130 = por %p128, %p129
      %p131 = scmp.ne.s32.totalorder %s120, %s121
      %p132 = scmp.eq.s32.totalorder %s23, 0
      %p133 = por %p131, %p132
      %p134 = scmp.ne.s32.totalorder %s120, %s121
      %p135 = scmp.eq.s32.totalorder %s24, 1
      %p136 = por %p134, %p135
      %p138 = scmp.ne.s32.totalorder %s121, %s137
      %p139 = scmp.eq.s32.totalorder %s24, 0
      %p140 = por %p138, %p139
      %p141 = scmp.le.s32.totalorder 1, %s18
      %p142 = scmp.lt.s32.totalorder %s18, 3
      %p143 = pnand %p141, %p142
      %p144 = pneg %p143
      // Predicated region
      $region9: #{tpu_custom_call.1} parent=5 // pred_check
        _
      $region10: #{tpu_custom_call.1} parent=5 // pred_check_branch
        %146 = sbr.rel (%p143) target = $region12
      $region11: #{tpu_custom_call.1} parent=5 // pred_region
        %s147 = ssub.s32 %s18, 1
        // Predicated region
        $region13: #{tpu_custom_call.1} parent=11 // pred_check
          %p148 = pneg %p65
        $region14: #{tpu_custom_call.1} parent=11 // pred_check_branch
          %150 = sbr.rel (%p148) target = $region16
        $region15: #{tpu_custom_call.1} parent=11 // pred_region
          %s152 = ssub.s32 512, 512
          %153 = vsyncadd [#allocation6], %s152
          %s154 = sshll.u32 [#allocation5], 4
          %s155 = int_to_ptr.vmem [resolvable:$true] %s154
          %160 = dma.hbm_to_vmem [thread:$0]  %s1, 512, %s155, [#allocation6], 128, 128, 8
        $region16: #{tpu_custom_call.1} parent=11 // pred_fallthru
          _
        // Predicated region
        $region17: #{tpu_custom_call.1} parent=11 // pred_check
          %p161 = pneg %p86
        $region18: #{tpu_custom_call.1} parent=11 // pred_check_branch
          %163 = sbr.rel (%p161) target = $region20
        $region19: #{tpu_custom_call.1} parent=11 // pred_region
          %s165 = ssub.s32 2304, 2304
          %166 = vsyncadd [#allocation6], %s165
          %s167 = sshll.u32 [#allocation7], 4
          %s168 = int_to_ptr.vmem [resolvable:$true] %s167
          %173 = dma.hbm_to_vmem [thread:$0]  %s2, 2304, %s168, [#allocation6], 256, 256, 16
        $region20: #{tpu_custom_call.1} parent=11 // pred_fallthru
          _
        // Predicated region
        $region21: #{tpu_custom_call.1} parent=11 // pred_check
          %p174 = pneg %p107
        $region22: #{tpu_custom_call.1} parent=11 // pred_check_branch
          %176 = sbr.rel (%p174) target = $region24
        $region23: #{tpu_custom_call.1} parent=11 // pred_region
          %s178 = ssub.s32 1280, 1280
          %179 = vsyncadd [#allocation9], %s178
          %s180 = sshll.u32 [#allocation8], 4
          %s181 = int_to_ptr.vmem [resolvable:$true] %s180
          %186 = dma.hbm_to_vmem [thread:$0]  %s3, 1280, %s181, [#allocation9], 256, 256, 16
        $region24: #{tpu_custom_call.1} parent=11 // pred_fallthru
          _
      $region12: #{tpu_custom_call.1} parent=5 // pred_fallthru
        _
      %p187 = scmp.lt.s32.totalorder %s18, 2
      // Predicated region
      $region25: #{tpu_custom_call.1} parent=5 // pred_check
        %p188 = pneg %p187
      $region26: #{tpu_custom_call.1} parent=5 // pred_check_branch
        %190 = sbr.rel (%p188) target = $region28
      $region27: #{tpu_custom_call.1} parent=5 // pred_region
        // Predicated region
        $region29: #{tpu_custom_call.1} parent=27 // pred_check
          %p191 = pneg %p38
        $region30: #{tpu_custom_call.1} parent=27 // pred_check_branch
          %193 = sbr.rel (%p191) target = $region32
        $region31: #{tpu_custom_call.1} parent=27 // pred_region
          %s194 = sand.u32 %s28, 1
          %s195 = scalar_lea.sflag [#allocation3], %s194
          %s196 = sand.u32 %s28, 1
          %s197 = smul.addr %s196, 8
          %s198 = scalar_lea.vmem [#allocation2], %s197
          %s199 = smul.u32 2, %s18
          %s201 = ssub.s32 128, 128
          %202 = vsyncadd %s195, %s201
          %s203 = smul.addr %s199, 64
          %s204 = scalar_lea.hbm %s0, %s203
          %s206 = sshll.u32 %s198, 4
          %s207 = int_to_ptr.vmem [resolvable:$true] %s206
          %209 = dma.hbm_to_vmem [thread:$0]  %s204, 128, %s207, %s195
        $region32: #{tpu_custom_call.1} parent=27 // pred_fallthru
          _
      $region28: #{tpu_custom_call.1} parent=5 // pred_fallthru
        _
      %p210 = scmp.le.s32.totalorder 1, %s18
      %p211 = scmp.lt.s32.totalorder %s18, 3
      %p212 = pnand %p210, %p211
      %p213 = pneg %p212
      // Predicated region
      $region33: #{tpu_custom_call.1} parent=5 // pred_check
        _
      $region34: #{tpu_custom_call.1} parent=5 // pred_check_branch
        %215 = sbr.rel (%p212) target = $region36
      $region35: #{tpu_custom_call.1} parent=5 // pred_region
        %s216 = ssub.s32 %s18, 1
        %s217 = sand.u32 %s31, 1
        %s218 = scalar_lea.sflag [#allocation3], %s217
        %s219 = sand.u32 %s31, 1
        %s220 = smul.addr %s219, 8
        %s221 = scalar_lea.vmem [#allocation2], %s220
        // Predicated region
        $region37: #{tpu_custom_call.1} parent=35 // pred_check
          %p222 = pneg %p44
        $region38: #{tpu_custom_call.1} parent=35 // pred_check_branch
          %224 = sbr.rel (%p222) target = $region40
        $region39: #{tpu_custom_call.1} parent=35 // pred_region
          %225 = dma.done %s218, 128
        $region40: #{tpu_custom_call.1} parent=35 // pred_fallthru
          _
        // Predicated region
        $region41: #{tpu_custom_call.1} parent=35 // pred_check
          %p226 = pneg %p65
        $region42: #{tpu_custom_call.1} parent=35 // pred_check_branch
          %228 = sbr.rel (%p226) target = $region44
        $region43: #{tpu_custom_call.1} parent=35 // pred_region
          %229 = dma.done [#allocation6], 512
        $region44: #{tpu_custom_call.1} parent=35 // pred_fallthru
          _
        // Predicated region
        $region45: #{tpu_custom_call.1} parent=35 // pred_check
          %p230 = pneg %p86
        $region46: #{tpu_custom_call.1} parent=35 // pred_check_branch
          %232 = sbr.rel (%p230) target = $region48
        $region47: #{tpu_custom_call.1} parent=35 // pred_region
          %233 = dma.done [#allocation6], 2304
        $region48: #{tpu_custom_call.1} parent=35 // pred_fallthru
          _
        // Predicated region
        $region49: #{tpu_custom_call.1} parent=35 // pred_check
          %p234 = pneg %p107
        $region50: #{tpu_custom_call.1} parent=35 // pred_check_branch
          %236 = sbr.rel (%p234) target = $region52
        $region51: #{tpu_custom_call.1} parent=35 // pred_region
          %237 = dma.done [#allocation9], 1280
        $region52: #{tpu_custom_call.1} parent=35 // pred_fallthru
          _
        %s238 = sand.u32 %s31, 1
        %s239 = scalar_lea.sflag [#allocation3], %s238
        %s240 = sand.u32 %s31, 1
        %s241 = smul.addr %s240, 8
        %s242 = scalar_lea.vmem [#allocation2], %s241
        %p243 = pneg %p44
        %p244 = pneg %p41
        %p245 = pneg %p65
        %p246 = pneg %p62
        %p247 = pneg %p86
        %p248 = pneg %p83
        %p249 = pneg %p107
        %p250 = pneg %p104
        %p251 = pneg %p133
        %p252 = pneg %p130
        %s253 = sand.u32 %s120, 1
        %s254 = scalar_lea.sflag [#allocation4], %s253
        %s255 = sand.u32 %s120, 1
        %s256 = smul.addr %s255, 8
        %s257 = scalar_lea.vmem [#allocation10], %s256
        %s258 = smul.u32 2, %s23
        %s259 = smul.u32 2, %s23
        %v260 = vld [vmem:[%s221] sm:$0xff]
        %v262 = vcombine.high %v260, %v260
        %264 = vrot.lane.b32.xlu0 %v260, 17
        %v265 = vpop.permute.xlu0 %264
        %266 = vrot.lane.b32.xlu0 %v262, 17
        %v267 = vpop.permute.xlu0 %266
        %v268 = vlaneseq
        %v269 = vand.u32 %v268, 127
        %vm270 = vcmp.lt.s32.totalorder %v269, 17
        %v271 = vsel %vm270, %v265, %v267
        %v272 = vsel %vm270, %v267, %v265
        %273 = vrot.lane.b32.xlu0 %v260, 16
        %v274 = vpop.permute.xlu0 %273
        %275 = vrot.lane.b32.xlu0 %v262, 16
        %v276 = vpop.permute.xlu0 %275
        %vm277 = vcmp.lt.s32.totalorder %v269, 16
        %v278 = vsel %vm277, %v274, %v276
        %v279 = vsel %vm277, %v276, %v274
        %280 = vrot.lane.b32.xlu0 %v260, 15
        %v281 = vpop.permute.xlu0 %280
        %282 = vrot.lane.b32.xlu0 %v262, 15
        %v283 = vpop.permute.xlu0 %282
        %vm284 = vcmp.lt.s32.totalorder %v269, 15
        %v285 = vsel %vm284, %v281, %v283
        %v286 = vsel %vm284, %v283, %v281
        %287 = vrot.lane.b32.xlu0 %v260, 1
        %v288 = vpop.permute.xlu0 %287
        %289 = vrot.lane.b32.xlu0 %v262, 1
        %v290 = vpop.permute.xlu0 %289
        %vm291 = vcmp.lt.s32.totalorder %v269, 1
        %v292 = vsel %vm291, %v288, %v290
        %v293 = vsel %vm291, %v290, %v288
        %294 = vrot.lane.b32.xlu0 %v260, 127
        %v295 = vpop.permute.xlu0 %294
        %296 = vrot.lane.b32.xlu0 %v262, 127
        %v297 = vpop.permute.xlu0 %296
        %vm298 = vcmp.lt.s32.totalorder %v269, 127
        %v299 = vsel %vm298, %v295, %v297
        %v300 = vsel %vm298, %v297, %v295
        %301 = vrot.lane.b32.xlu0 %v260, 113
        %v302 = vpop.permute.xlu0 %301
        %303 = vrot.lane.b32.xlu0 %v262, 113
        %v304 = vpop.permute.xlu0 %303
        %vm305 = vcmp.lt.s32.totalorder %v269, 113
        %v306 = vsel %vm305, %v302, %v304
        %v307 = vsel %vm305, %v304, %v302
        %308 = vrot.lane.b32.xlu0 %v260, 112
        %v309 = vpop.permute.xlu0 %308
        %310 = vrot.lane.b32.xlu0 %v262, 112
        %v311 = vpop.permute.xlu0 %310
        %vm312 = vcmp.lt.s32.totalorder %v269, 112
        %v313 = vsel %vm312, %v309, %v311
        %v314 = vsel %vm312, %v311, %v309
        %315 = vrot.lane.b32.xlu0 %v260, 111
        %v316 = vpop.permute.xlu0 %315
        %317 = vrot.lane.b32.xlu0 %v262, 111
        %v318 = vpop.permute.xlu0 %317
        %vm319 = vcmp.lt.s32.totalorder %v269, 111
        %v320 = vsel %vm319, %v316, %v318
        %v321 = vsel %vm319, %v318, %v316
        %v324 = vrot.slane %v279, 4
        %v325 = vrot.slane %v278, 4
        %v330 = vrot.slane %v293, 4
        %v331 = vrot.slane %v292, 4
        %v336 = vrot.slane %v299, 4
        %v337 = vrot.slane %v300, 4
        %v342 = vrot.slane %v313, 4
        %v343 = vrot.slane %v314, 4
        %vm346 = vcmask 1043456
        %v347 = vsel %vm346, %v272, %v324
        %v348 = vsel %vm346, %v271, %v325
        %v349 = vsel %vm346, %v286, %v330
        %v350 = vsel %vm346, %v285, %v331
        %v351 = vsel %vm346, %v260, %v336
        %v352 = vsel %vm346, %v262, %v337
        %v353 = vsel %vm346, %v306, %v342
        %v354 = vsel %vm346, %v307, %v343
        %v355 = vld [vmem:[#allocation8] sm:$0xff]
        %v356 = vld [vmem:[#allocation8 + $0x8] sm:$0xff]
        %v357 = vld [vmem:[#allocation8 + $0x10] sm:$0xff]
        %v358 = vld [vmem:[#allocation8 + $0x18] sm:$0xff]
        %v359 = vld [vmem:[#allocation8 + $0x20] sm:$0xff]
        %v360 = vld [vmem:[#allocation8 + $0x28] sm:$0xff]
        %v361 = vld [vmem:[#allocation8 + $0x30] sm:$0xff]
        %v362 = vld [vmem:[#allocation8 + $0x38] sm:$0xff]
        %v363 = vld [vmem:[#allocation8 + $0x40] sm:$0xf]
        %v364 = vld [vmem:[#allocation8 + $0x48] sm:$0xf]
        %v365 = vmul.f32 %v347, %v355
        %v366 = vmul.f32 %v348, %v356
        %v367 = vmul.f32 %v349, %v357
        %v368 = vmul.f32 %v350, %v358
        %v369 = vmul.f32 %v351, %v359
        %v370 = vmul.f32 %v352, %v360
        %v371 = vmul.f32 %v353, %v361
        %v372 = vmul.f32 %v354, %v362
        %v373 = vmul.f32 %v320, %v363
        %v374 = vmul.f32 %v321, %v364
        %v375 = vld [vmem:[#allocation5] sm:$0xff]
        %v376 = vld [vmem:[#allocation5 + $0x8] sm:$0xff]
        %v377 = vld [vmem:[#allocation5 + $0x10] sm:$0xff]
        %v378 = vld [vmem:[#allocation5 + $0x18] sm:$0xff]
        %v379 = vld [vmem:[#allocation7] sm:$0xff]
        %v380 = vld [vmem:[#allocation7 + $0x8] sm:$0xff]
        %v381 = vld [vmem:[#allocation7 + $0x10] sm:$0xff]
        %v382 = vld [vmem:[#allocation7 + $0x18] sm:$0xff]
        %v383 = vld [vmem:[#allocation7 + $0x20] sm:$0xff]
        %v384 = vld [vmem:[#allocation7 + $0x28] sm:$0xff]
        %v385 = vld [vmem:[#allocation7 + $0x30] sm:$0xff]
        %v386 = vld [vmem:[#allocation7 + $0x38] sm:$0xff]
        %v387 = vld [vmem:[#allocation7 + $0x40] sm:$0xff]
        %v388 = vld [vmem:[#allocation7 + $0x48] sm:$0xff]
        %v389 = vld [vmem:[#allocation7 + $0x50] sm:$0xff]
        %v390 = vld [vmem:[#allocation7 + $0x58] sm:$0xff]
        %v391 = vld [vmem:[#allocation7 + $0x60] sm:$0xff]
        %v392 = vld [vmem:[#allocation7 + $0x68] sm:$0xff]
        %v393 = vld [vmem:[#allocation7 + $0x70] sm:$0xff]
        %v394 = vld [vmem:[#allocation7 + $0x78] sm:$0xff]
        %s395 = scalar_lea.vmem [#allocation7], 128
        %v396 = vld [vmem:[%s395] ss:$8 sm:$0x3]
        %vm397 = vcmask 293888
        %v399 = vsel %vm397, %v375, 0
        %v402 = vsel %vm397, %v376, 0
        %v405 = vsel %vm397, %v377, 0
        %v408 = vsel %vm397, %v378, 0
        %v411 = vsel %vm346, %v373, 0
        %v414 = vsel %vm346, %v374, 0
        %416 = vmatprep.subr.mxu0 %v366
        %417 = vmatpush1.msra.mxu0 %v365
        %418 = vmatprep.subr.mxu0 %v368
        %419 = vmatpush1.msra.mxu0 %v367
        %420 = vmatprep.subr.mxu0 %v370
        %421 = vmatpush1.msra.mxu0 %v369
        %422 = vmatprep.subr.mxu0 %v372
        %423 = vmatpush1.msra.mxu0 %v371
        %424 = vmatprep.subr.mxu0 %v414
        %425 = vmatpush1.msra.mxu0 %v411
        %426 = vmatprep.subr.mxu0 0.0
        %427 = vmatpush1.msra.mxu0 0.0
        %428 = vmatprep.subr.mxu0 0.0
        %429 = vmatpush1.msra.mxu0 0.0
        %430 = vmatprep.subr.mxu0 0.0
        %431 = vmatpush1.msra.mxu0 0.0
        %432 = vmatprep.subr.mxu0 0.0
        %433 = vmatpush1.msra.mxu0 0.0
        %434 = vmatprep.subr.mxu0 0.0
        %435 = vmatpush1.msra.mxu0 0.0
        %436 = vmatprep.subr.mxu0 0.0
        %437 = vmatpush1.msra.mxu0 0.0
        %438 = vmatprep.subr.mxu0 0.0
        %439 = vmatpush1.msra.mxu0 0.0
        %440 = vmatprep.subr.mxu0 0.0
        %441 = vmatpush1.msra.mxu0 0.0
        %442 = vmatprep.subr.mxu0 0.0
        %443 = vmatpush1.msra.mxu0 0.0
        %444 = vmatprep.subr.mxu0 0.0
        %445 = vmatpush1.msra.mxu0 0.0
        %446 = vmatprep.subr.mxu0 0.0
        %447 = vmatpush1.msra.mxu0 0.0
        %448 = vmatprep.subr.mxu0 0.0
        %449 = vmatpush1.msra.mxu0 0.0
        %450 = vmatprep.subr.mxu0 0.0
        %451 = vmatpush1.msra.mxu0 0.0
        %452 = vmatprep.subr.mxu0 0.0
        %453 = vmatpush1.msra.mxu0 0.0
        %454 = vmatprep.subr.mxu0 0.0
        %455 = vmatpush1.msra.mxu0 0.0
        %456 = vmatprep.subr.mxu0 0.0
        %457 = vmatpush1.msra.mxu0 0.0
        %458 = vmatprep.subr.mxu0 0.0
        %459 = vmatpush1.msra.mxu0 0.0
        %460 = vmatprep.subr.mxu0 0.0
        %461 = vmatpush1.msra.mxu0 0.0
        %462 = vmatprep.subr.mxu0 0.0
        %463 = vmatpush1.msra.mxu0 0.0
        %464 = vmatprep.subr.mxu0 0.0
        %465 = vmatpush1.msra.mxu0 0.0
        %466 = vmatprep.subr.mxu0 0.0
        %467 = vmatpush1.msra.mxu0 0.0
        %468 = vmatprep.subr.mxu0 0.0
        %469 = vmatpush1.msra.mxu0 0.0
        %470 = vmatprep.subr.mxu0 0.0
        %471 = vmatpush1.msra.mxu0 0.0
        %472 = vmatprep.subr.mxu0 0.0
        %473 = vmatpush1.msra.mxu0 0.0
        %474 = vmatprep.subr.mxu0 0.0
        %475 = vmatpush1.msra.mxu0 0.0
        %476 = vmatprep.subr.mxu0 0.0
        %477 = vmatpush1.msra.mxu0 0.0
        %478 = vmatprep.subr.mxu0 0.0
        %479 = vmatpush1.msra.mxu0 0.0
        %480 = vmatprep.mubr.f32.mxu0 0.0
        %481 = vmatmul.mubr.f32.gmra.mrb[0].mxu0 %v399
        %v482 = vpop.f32.mrb[0].mxu0
        %v483 = vadd.f32 %v379, %v482
        %v484 = vpop.f32.mrb[0].mxu0
        %v485 = vadd.f32 %v380, %v484
        %486 = vmatprep.mubr.f32.mxu0 0.0
        %487 = vmatmul.mubr.f32.gmra.mrb[0].mxu0 %v402
        %v488 = vpop.f32.mrb[0].mxu0
        %v489 = vadd.f32 %v381, %v488
        %v490 = vpop.f32.mrb[0].mxu0
        %v491 = vadd.f32 %v382, %v490
        %492 = vmatprep.mubr.f32.mxu0 0.0
        %493 = vmatmul.mubr.f32.gmra.mrb[0].mxu0 %v405
        %v494 = vpop.f32.mrb[0].mxu0
        %v495 = vadd.f32 %v383, %v494
        %v496 = vpop.f32.mrb[0].mxu0
        %v497 = vadd.f32 %v384, %v496
        %498 = vmatprep.mubr.f32.mxu0 0.0
        %499 = vmatmul.mubr.f32.gmra.mrb[0].mxu0 %v408
        %v500 = vpop.f32.mrb[0].mxu0
        %v501 = vadd.f32 %v385, %v500
        %v502 = vpop.f32.mrb[0].mxu0
        %v503 = vadd.f32 %v386, %v502
        %504 = vdwg.mxu0
        %v505 = vmax.f32 %v483, 0.0
        %v506 = vmax.f32 %v485, 0.0
        %v507 = vmax.f32 %v489, 0.0
        %v508 = vmax.f32 %v491, 0.0
        %v509 = vmax.f32 %v495, 0.0
        %v510 = vmax.f32 %v497, 0.0
        %v511 = vmax.f32 %v501, 0.0
        %v512 = vmax.f32 %v503, 0.0
        %v513 = vmul.f32 %v505, %v387
        %v514 = vmul.f32 %v506, %v388
        %v515 = vmul.f32 %v507, %v389
        %v516 = vmul.f32 %v508, %v390
        %v517 = vmul.f32 %v509, %v391
        %v518 = vmul.f32 %v510, %v392
        %v519 = vmul.f32 %v511, %v393
        %v520 = vmul.f32 %v512, %v394
        %v521 = vadd.f32 %v513, %v515
        %v522 = vadd.f32 %v521, %v517
        %v523 = vadd.f32 %v522, %v519
        %v524 = vrot.slane %v523, 4
        %v525 = vadd.f32 %v523, %v524
        %v526 = vrot.slane %v525, 2
        %v527 = vadd.f32 %v525, %v526
        %v528 = vrot.slane %v527, 1
        %v529 = vadd.f32 %v527, %v528
        %v530 = vadd.f32 %v514, %v516
        %v531 = vadd.f32 %v530, %v518
        %v532 = vadd.f32 %v531, %v520
        %v533 = vrot.slane %v532, 4
        %v534 = vadd.f32 %v532, %v533
        %v535 = vrot.slane %v534, 2
        %v536 = vadd.f32 %v534, %v535
        %v537 = vrot.slane %v536, 1
        %v538 = vadd.f32 %v536, %v537
        %v540 = vlaneseq
        %v541 = vshrl.u32 %v540, 7
        %v542 = vsub.s32 0, %v541
        %v543 = vrot.slane %v396, %v542
        %v544 = vlaneseq
        %v545 = vshrl.u32 %v544, 7
        %v546 = vsub.s32 1, %v545
        %v547 = vrot.slane %v396, %v546
        %v550 = vadd.f32 %v529, %v543
        %v551 = vadd.f32 %v538, %v547
        %v552 = vxor.u32 %v550, 2147483648
        %v553 = vxor.u32 %v551, 2147483648
        %v554 = vmul.f32 %v552, 1.442695
        %v555 = vpow.pop %v554
        %v556 = vmul.f32 %v553, 1.442695
        %v557 = vpow.pop %v556
        %v558 = vadd.f32 %v555, 1.0
        %v559 = vadd.f32 %v557, 1.0
        %v560 = vrcp.pop %v558
        %v561 = vmul.f32 1.0, %v560
        %v562 = vrcp.pop %v559
        %v563 = vmul.f32 1.0, %v562
        %v564 = vlaneseq
        %v565 = vshrl.u32 %v564, 7
        %v566 = vsub.s32 0, %v565
        %v567 = vrot.slane %v561, %v566
        %v568 = vlaneseq
        %v569 = vshrl.u32 %v568, 7
        %v570 = vsub.s32 0, %v569
        %v571 = vrot.slane %v563, %v570
        %v572 = vmul.f32 %v567, %v260
        %v573 = vmul.f32 %v571, %v262
        %v576 = vcombine.low %v572, %v573
        %578 = vst [vmem:[%s257] sm:$0xff] %v576
        %s579 = sand.u32 %s120, 1
        %s580 = scalar_lea.sflag [#allocation4], %s579
        %s581 = sand.u32 %s120, 1
        %s582 = smul.addr %s581, 8
        %s583 = scalar_lea.vmem [#allocation10], %s582
        // Predicated region
        $region53: #{tpu_custom_call.1} parent=35 // pred_check
          %p584 = pneg %p130
        $region54: #{tpu_custom_call.1} parent=35 // pred_check_branch
          %586 = sbr.rel (%p584) target = $region56
        $region55: #{tpu_custom_call.1} parent=35 // pred_region
          %s587 = smul.u32 2, %s23
          %s589 = ssub.s32 128, 128
          %590 = vsyncadd %s580, %s589
          %s591 = smul.addr %s587, 64
          %s592 = scalar_lea.hbm %s4, %s591
          %s594 = sshll.u32 %s583, 4
          %s595 = int_to_ptr.vmem [resolvable:$true] %s594
          %597 = dma.vmem_to_hbm [thread:$0]  %s595, 128, %s592, %s580
        $region56: #{tpu_custom_call.1} parent=35 // pred_fallthru
          _
      $region36: #{tpu_custom_call.1} parent=5 // pred_fallthru
        _
      %p598 = scmp.le.s32.totalorder 2, %s18
      // Predicated region
      $region57: #{tpu_custom_call.1} parent=5 // pred_check
        %p599 = pneg %p598
      $region58: #{tpu_custom_call.1} parent=5 // pred_check_branch
        %601 = sbr.rel (%p599) target = $region60
      $region59: #{tpu_custom_call.1} parent=5 // pred_region
        %s602 = ssub.s32 %s18, 2
        // Predicated region
        $region61: #{tpu_custom_call.1} parent=59 // pred_check
          %p603 = pneg %p136
        $region62: #{tpu_custom_call.1} parent=59 // pred_check_branch
          %605 = sbr.rel (%p603) target = $region64
        $region63: #{tpu_custom_call.1} parent=59 // pred_region
          %s606 = sand.u32 %s121, 1
          %s607 = scalar_lea.sflag [#allocation4], %s606
          %s608 = sand.u32 %s121, 1
          %s609 = smul.addr %s608, 8
          %s610 = scalar_lea.vmem [#allocation10], %s609
          %611 = dma.done %s607, 128
        $region64: #{tpu_custom_call.1} parent=59 // pred_fallthru
          _
      $region60: #{tpu_custom_call.1} parent=5 // pred_fallthru
        _
    $region6: #{tpu_custom_call.1} parent=1 // loop_footer
      %s22 = sadd.s32 1, %s18
    $region7: #{tpu_custom_call.1} parent=1 // loop_footer_branch
      %17 = sbr.rel target = $region3
    $region8: #{tpu_custom_call.1} parent=1 // loop_exit
      _
    %612 = vsyncpa [#allocation3], 1
    %s613 = scalar_lea.sflag [#allocation3], 1
    %614 = vsyncpa %s613, 1
    %615 = vsyncpa [#allocation6], 1
    %616 = vsyncpa [#allocation9], 1
    %617 = vsyncpa [#allocation4], 1
    %s618 = scalar_lea.sflag [#allocation4], 1
    %619 = vsyncpa %s618, 1

</llo_original>
